<compile_context>
chip_gen: v6e
topology: v6e:2x2x1
jax: 0.10.0
libtpu: 0.0.40
codegen_flags: <defaults>
</compile_context>

<pallas_src>
import jax
import jax.numpy as jnp
from jax.experimental import pallas as pl
from jax.experimental.pallas import tpu as pltpu

MEM_DIM = 100            # treeparams['mem_dim']
TEXT_HID = 50            # textparams['hidden_dim'] * numDirs (rnn, 1 direction)
K = MEM_DIM + TEXT_HID   # 150
K_PAD = 152              # contraction dim padded to a multiple of 8 (zero-filled)
OUT_DIM = 4              # nn.Linear(mem_dim + hidden, 4)
OUT_PAD = 128            # lane-dense output tile; real logits live in [:, :OUT_DIM]


def _joint_fc_kernel(x_ref, w_ref, b_ref, o_ref):
    # One MXU push per M-tile: (tile, K_PAD) @ (K_PAD, OUT_PAD), f32 accumulate,
    # bias add on the VPU, lane-dense (128-wide) store.
    acc = jnp.dot(x_ref[...], w_ref[...], preferred_element_type=jnp.float32)
    o_ref[...] = acc + b_ref[...]


def pack_fc_params(fc_weight, fc_bias, compute_dtype=jnp.float32):
    """One-time packing of the torch-layout Linear params (hoisted out of the forward path).

    fc_weight: (OUT_DIM, K) torch layout; fc_bias: (OUT_DIM,).
    Returns w_packed (K_PAD, OUT_PAD) in compute_dtype and b_packed (1, OUT_PAD) f32."""
    w_t = jnp.asarray(fc_weight, jnp.float32).T                       # (K, OUT_DIM)
    w_packed = jnp.zeros((K_PAD, OUT_PAD), jnp.float32)
    w_packed = w_packed.at[:K, :OUT_DIM].set(w_t).astype(compute_dtype)
    b_packed = jnp.zeros((1, OUT_PAD), jnp.float32)
    b_packed = b_packed.at[0, :OUT_DIM].set(jnp.asarray(fc_bias, jnp.float32))
    return w_packed, b_packed


def joint_fc_batched(tree_batch, text_batch, w_packed, b_packed, *, m_tile=256):
    """Batched FC head. tree_batch (M, MEM_DIM), text_batch (M, TEXT_HID) -> logits (M, OUT_DIM).
    Reproduces torch's cat(tree, text) @ W.T + b per row."""
    M = tree_batch.shape[0]
    dtype = w_packed.dtype

    # Single aligned activation slab: concat + zero-pad K to K_PAD, pad M up to tile multiple.
    x = jnp.concatenate([tree_batch.astype(dtype), text_batch.astype(dtype)], axis=1)
    m_pad8 = max(8, -(-M // 8) * 8)
    tile = min(m_tile, m_pad8)
    m_padded = -(-m_pad8 // tile) * tile
    x = jnp.pad(x, ((0, m_padded - M), (0, K_PAD - K)))

    out = pl.pallas_call(
        _joint_fc_kernel,
        out_shape=jax.ShapeDtypeStruct((m_padded, OUT_PAD), jnp.float32),
        grid=(m_padded // tile,),
        in_specs=[
            pl.BlockSpec((tile, K_PAD), lambda i: (i, 0)),      # activations: streamed per tile
            pl.BlockSpec((K_PAD, OUT_PAD), lambda i: (0, 0)),   # weight: resident across grid
            pl.BlockSpec((1, OUT_PAD), lambda i: (0, 0)),       # bias: resident across grid
        ],
        out_specs=pl.BlockSpec((tile, OUT_PAD), lambda i: (i, 0)),
        compiler_params=pltpu.CompilerParams(
            dimension_semantics=("parallel",)),                 # shard M-tiles across v7x's 2 TCs
    )(x, w_packed, b_packed)
    return out[:M, :OUT_DIM]


def joint_model_forward(tree_vec, text_vec, w_packed, b_packed):
    """Original single-example jointModel.forward semantics: out = fc(cat(treeVec, textVec))."""
    out = joint_fc_batched(tree_vec.reshape(1, MEM_DIM), text_vec.reshape(1, TEXT_HID),
                           w_packed, b_packed)
    return out.reshape(OUT_DIM)


if __name__ == "__main__":
    key = jax.random.PRNGKey(0)
    k_tree, k_text, k_w, k_b = jax.random.split(key, 4)

    # Deterministic nn.Linear(150, 4) parameters (torch layout: weight (4, 150)).
    bound = K ** -0.5
    fc_weight = jax.random.uniform(k_w, (OUT_DIM, K), minval=-bound, maxval=bound,
                                   dtype=jnp.float32)
    fc_bias = jax.random.uniform(k_b, (OUT_DIM,), minval=-bound, maxval=bound,
                                 dtype=jnp.float32)

    # Weights packed ONCE (transpose / pad / cast hoisted out of the forward path).
    w_f32, b_f32 = pack_fc_params(fc_weight, fc_bias, jnp.float32)
    w_bf16, b_bf16 = pack_fc_params(fc_weight, fc_bias, jnp.bfloat16)

    # Batched stand-ins for the (external) tree / text encoder outputs.
    M = 512
    tree_batch = jax.random.normal(k_tree, (M, MEM_DIM), dtype=jnp.float32)
    text_batch = jax.random.normal(k_text, (M, TEXT_HID), dtype=jnp.float32)

    # Pure-JAX reference: torch semantics cat + Linear, per row.
    comb = jnp.concatenate([tree_batch, text_batch], axis=1)
    ref = jnp.dot(comb, fc_weight.T, precision=jax.lax.Precision.HIGHEST) + fc_bias

    # f32 compute path (tight tolerance).
    out = jax.block_until_ready(joint_fc_batched(tree_batch, text_batch, w_f32, b_f32))
    assert out.shape == (M, OUT_DIM)
    assert jnp.allclose(out, ref, atol=1e-4, rtol=1e-4), float(jnp.max(jnp.abs(out - ref)))

    # bf16 compute path (v6e / v7x MXU-friendly), f32 accumulate — looser tolerance.
    out_bf16 = jax.block_until_ready(joint_fc_batched(tree_batch, text_batch, w_bf16, b_bf16))
    assert jnp.allclose(out_bf16, ref, atol=5e-2, rtol=0.0), \
        float(jnp.max(jnp.abs(out_bf16 - ref)))

    # Single-example path (original forward semantics preserved).
    out1 = jax.block_until_ready(
        joint_model_forward(tree_batch[0], text_batch[0], w_f32, b_f32))
    assert out1.shape == (OUT_DIM,)
    assert jnp.allclose(out1, ref[0], atol=1e-4, rtol=1e-4)

    print("KERNEL_OK")
</pallas_src>

<mosaic_0001>
module attributes {stable_mosaic.version = 11 : i64} {
  func.func @_joint_fc_kernel(%arg0: i32, %arg1: memref<256x152xf32, #tpu.memory_space<vmem>>, %arg2: memref<152x128xf32, #tpu.memory_space<vmem>>, %arg3: memref<1x128xf32, #tpu.memory_space<vmem>>, %arg4: memref<256x128xf32, #tpu.memory_space<vmem>>) attributes {dimension_semantics = [#tpu.dimension_semantics<parallel>], iteration_bounds = array<i64: 2>, scalar_prefetch = 0 : i64, scratch_operands = 0 : i64, tpu.core_type = #tpu.core_type<tc>, window_params = [{transform_indices = @transform_0, window_bounds = array<i64: 256, 152>}, {pipeline_mode = #tpu.pipeline_mode<synchronous>, transform_indices = @transform_1, window_bounds = array<i64: 152, 128>}, {pipeline_mode = #tpu.pipeline_mode<synchronous>, transform_indices = @transform_2, window_bounds = array<i64: 1, 128>}, {transform_indices = @transform_3, window_bounds = array<i64: 256, 128>}]} {
    %c0 = arith.constant 0 : index
    %c0_0 = arith.constant 0 : index
    %0 = vector.load %arg1[%c0, %c0_0] : memref<256x152xf32, #tpu.memory_space<vmem>>, vector<256x152xf32>
    %c0_1 = arith.constant 0 : index
    %c0_2 = arith.constant 0 : index
    %1 = vector.load %arg2[%c0_1, %c0_2] : memref<152x128xf32, #tpu.memory_space<vmem>>, vector<152x128xf32>
    %cst = arith.constant dense<0.000000e+00> : vector<256x128xf32>
    %2 = tpu.matmul %0, %1, %cst {dimension_numbers = #tpu.dot_dimension_numbers<[1], [0], [0], [1], [0, 0, 1, 1], [], []>} : vector<256x152xf32>, vector<152x128xf32>, vector<256x128xf32> -> vector<256x128xf32>
    %c0_3 = arith.constant 0 : index
    %c0_4 = arith.constant 0 : index
    %3 = vector.load %arg3[%c0_3, %c0_4] : memref<1x128xf32, #tpu.memory_space<vmem>>, vector<1x128xf32>
    %4 = vector.broadcast %3 : vector<1x128xf32> to vector<256x128xf32>
    %5 = arith.addf %2, %4 : vector<256x128xf32>
    %c0_5 = arith.constant 0 : index
    %c0_6 = arith.constant 0 : index
    %6 = vector.load %arg4[%c0_5, %c0_6] : memref<256x128xf32, #tpu.memory_space<vmem>>, vector<256x128xf32>
    tpu.vector_store %arg4[%c0_5, %c0_6], %5 {strides = array<i32>} : memref<256x128xf32, #tpu.memory_space<vmem>>, vector<256x128xf32>,
    return
  }
  func.func @transform_0(%arg0: i32) -> (i32, i32) {
    %c0_i32 = arith.constant 0 : i32
    %c0_i32_0 = arith.constant 0 : i32
    return %arg0, %c0_i32 : i32, i32
  }
  func.func @transform_1(%arg0: i32) -> (i32, i32) {
    %c0_i32 = arith.constant 0 : i32
    %c0_i32_0 = arith.constant 0 : i32
    %c0_i32_1 = arith.constant 0 : i32
    return %c0_i32, %c0_i32_0 : i32, i32
  }
  func.func @transform_2(%arg0: i32) -> (i32, i32) {
    %c0_i32 = arith.constant 0 : i32
    %c0_i32_0 = arith.constant 0 : i32
    %c0_i32_1 = arith.constant 0 : i32
    return %c0_i32, %c0_i32_0 : i32, i32
  }
  func.func @transform_3(%arg0: i32) -> (i32, i32) {
    %c0_i32 = arith.constant 0 : i32
    %c0_i32_0 = arith.constant 0 : i32
    return %arg0, %c0_i32 : i32, i32
  }
}

</mosaic_0001>

<llo_original>
// kernel: tpu_custom_call.1
$region0: #{tpu_custom_call.1}
  #allocation0 [shape = 'u32[]', space=smem, size = 0x4, offset = 0x4, fixed_abs, tag = 'smem constant byte address 0x4 - core index']
  #allocation1 [shape = 'u32[144,128]{1,0:T(1,128)}', space=vmem, size = 0x12000, scoped, tag = 'internal scratch']
  %s0 = inlined_call_operand.vmem [shape: f32[512,152], index: 0, kind: input, shape index: {}]
  %s1 = inlined_call_operand.vmem [shape: f32[152,128], index: 1, kind: input, shape index: {}]
  %s2 = inlined_call_operand.vmem [shape: f32[1,128], index: 2, kind: input, shape index: {}]
  %s3 = inlined_call_operand.hbm [shape: f32[512,128], index: 3, kind: output, shape index: {}]
  %s4 = sld [smem:[#allocation0]]
  $region45: #{tpu_custom_call.1} parent=0
    _
  %s6 = ssub.s32 1, %s4
  %s7 = scalar_select 0, %s6, %s4
  $region1: #{tpu_custom_call.1} parent=0
    #allocation2 [shape = 'u8[262144]{0}', space=vmem, size = 0x40000, scoped, tag = 'output window, operand 0']
    #allocation3 [shape = 's32[2]{0}', space=sflag, size = 0x8, scoped, tag = 'scoped memory for tpu_custom_call.1']
    %8 = vsyncpa [#allocation3], 0
    %s9 = scalar_lea.sflag [#allocation3], 1
    %10 = vsyncpa %s9, 0
    loop: start=0, step=1, limit=4
    $region2: #{tpu_custom_call.1} parent=1 // loop_pre_header
      _
    $region3: #{tpu_custom_call.1} parent=1 // loop_header
      %s12 = sphi 0, %s16
      %p13 = scmp.ge.s32.totalorder %s12, 4
      %s22 = sphi 0, %s24
      %s25 = sphi 0, %s22
      %s26 = sphi 0, %s25
      %s42 = sphi 0, %s26
      %s46 = sphi 0, %s46
      %s48 = sphi 0, %s46
      %s49 = sphi 0, %s48
      %s63 = sphi 0, %s49
      %s67 = sphi 0, %s67
      %s69 = sphi 0, %s67
      %s70 = sphi 0, %s69
      %s84 = sphi 0, %s70
      %s90 = sphi 0, %s92
      %s93 = sphi 0, %s90
      %s94 = sphi 0, %s93
      %s110 = sphi 0, %s94
    $region4: #{tpu_custom_call.1} parent=1 // loop_header_branch
      %15 = sbr.rel (%p13) target = $region8
    $region5: #{tpu_custom_call.1} parent=1 // loop_body
      %s17 = ssub.s32 %s12, 1
      %s18 = ssub.s32 %s12, 2
      %s19 = sadd.s32 %s12, 1
      %s20 = ssub.s32 %s12, %s19
      %p21 = scmp.eq.s32.totalorder %s20, 0
      %s23 = sadd.s32 %s22, 1
      %s24 = scalar_select %p21, %s22, %s23
      %p27 = pneg %p21
      %p28 = scmp.eq.s32.totalorder %s12, 1
      %p29 = por %p27, %p28
      %p30 = scmp.ne.s32.totalorder %s22, %s25
      %p31 = scmp.eq.s32.totalorder %s12, 0
      %p32 = por %p30, %p31
      %p33 = scmp.ne.s32.totalorder %s22, %s25
      %p34 = scmp.eq.s32.totalorder %s17, 1
      %p35 = por %p33, %p34
      %p36 = scmp.ne.s32.totalorder %s25, %s26
      %p37 = scmp.eq.s32.totalorder %s17, 0
      %p38 = por %p36, %p37
      %p39 = scmp.ne.s32.totalorder %s25, %s26
      %p40 = scmp.eq.s32.totalorder %s18, 1
      %p41 = por %p39, %p40
      %p43 = scmp.ne.s32.totalorder %s26, %s42
      %p44 = scmp.eq.s32.totalorder %s18, 0
      %p45 = por %p43, %p44
      %s47 = sadd.s32 %s46, 1
      %p50 = scmp.eq.s32.totalorder %s12, 1
      %p51 = scmp.ne.s32.totalorder %s46, %s48
      %p52 = scmp.eq.s32.totalorder %s12, 0
      %p53 = por %p51, %p52
      %p54 = scmp.ne.s32.totalorder %s46, %s48
      %p55 = scmp.eq.s32.totalorder %s17, 1
      %p56 = por %p54, %p55
      %p57 = scmp.ne.s32.totalorder %s48, %s49
      %p58 = scmp.eq.s32.totalorder %s17, 0
      %p59 = por %p57, %p58
      %p60 = scmp.ne.s32.totalorder %s48, %s49
      %p61 = scmp.eq.s32.totalorder %s18, 1
      %p62 = por %p60, %p61
      %p64 = scmp.ne.s32.totalorder %s49, %s63
      %p65 = scmp.eq.s32.totalorder %s18, 0
      %p66 = por %p64, %p65
      %s68 = sadd.s32 %s67, 1
      %p71 = scmp.eq.s32.totalorder %s12, 1
      %p72 = scmp.ne.s32.totalorder %s67, %s69
      %p73 = scmp.eq.s32.totalorder %s12, 0
      %p74 = por %p72, %p73
      %p75 = scmp.ne.s32.totalorder %s67, %s69
      %p76 = scmp.eq.s32.totalorder %s17, 1
      %p77 = por %p75, %p76
      %p78 = scmp.ne.s32.totalorder %s69, %s70
      %p79 = scmp.eq.s32.totalorder %s17, 0
      %p80 = por %p78, %p79
      %p81 = scmp.ne.s32.totalorder %s69, %s70
      %p82 = scmp.eq.s32.totalorder %s18, 1
      %p83 = por %p81, %p82
      %p85 = scmp.ne.s32.totalorder %s70, %s84
      %p86 = scmp.eq.s32.totalorder %s18, 0
      %p87 = por %p85, %p86
      %s88 = ssub.s32 %s12, %s19
      %p89 = scmp.eq.s32.totalorder %s88, 0
      %s91 = sadd.s32 %s90, 1
      %s92 = scalar_select %p89, %s90, %s91
      %p95 = pneg %p89
      %p96 = scmp.eq.s32.totalorder %s12, 1
      %p97 = por %p95, %p96
      %p98 = scmp.ne.s32.totalorder %s90, %s93
      %p99 = scmp.eq.s32.totalorder %s12, 0
      %p100 = por %p98, %p99
      %p101 = scmp.ne.s32.totalorder %s90, %s93
      %p102 = scmp.eq.s32.totalorder %s17, 1
      %p103 = por %p101, %p102
      %p104 = scmp.ne.s32.totalorder %s93, %s94
      %p105 = scmp.eq.s32.totalorder %s17, 0
      %p106 = por %p104, %p105
      %p107 = scmp.ne.s32.totalorder %s93, %s94
      %p108 = scmp.eq.s32.totalorder %s18, 1
      %p109 = por %p107, %p108
      %p111 = scmp.ne.s32.totalorder %s94, %s110
      %p112 = scmp.eq.s32.totalorder %s18, 0
      %p113 = por %p111, %p112
      %p114 = scmp.le.s32.totalorder 1, %s12
      %p115 = scmp.lt.s32.totalorder %s12, 3
      %p116 = pnand %p114, %p115
      %p117 = pneg %p116
      // Predicated region
      $region9: #{tpu_custom_call.1} parent=5 // pred_check
        _
      $region10: #{tpu_custom_call.1} parent=5 // pred_check_branch
        %119 = sbr.rel (%p116) target = $region12
      $region11: #{tpu_custom_call.1} parent=5 // pred_region
        %s120 = ssub.s32 %s12, 1
        // Predicated region
        $region13: #{tpu_custom_call.1} parent=11 // pred_check
          %p121 = pneg %p59
        $region14: #{tpu_custom_call.1} parent=11 // pred_check_branch
          %123 = sbr.rel (%p121) target = $region16
        $region15: #{tpu_custom_call.1} parent=11 // pred_region
          _
        $region16: #{tpu_custom_call.1} parent=11 // pred_fallthru
          _
        // Predicated region
        $region17: #{tpu_custom_call.1} parent=11 // pred_check
          %p124 = pneg %p80
        $region18: #{tpu_custom_call.1} parent=11 // pred_check_branch
          %126 = sbr.rel (%p124) target = $region20
        $region19: #{tpu_custom_call.1} parent=11 // pred_region
          _
        $region20: #{tpu_custom_call.1} parent=11 // pred_fallthru
          _
      $region12: #{tpu_custom_call.1} parent=5 // pred_fallthru
        _
      %p127 = scmp.lt.s32.totalorder %s12, 2
      // Predicated region
      $region21: #{tpu_custom_call.1} parent=5 // pred_check
        %p128 = pneg %p127
      $region22: #{tpu_custom_call.1} parent=5 // pred_check_branch
        %130 = sbr.rel (%p128) target = $region24
      $region23: #{tpu_custom_call.1} parent=5 // pred_region
        // Predicated region
        $region25: #{tpu_custom_call.1} parent=23 // pred_check
          %p131 = pneg %p32
        $region26: #{tpu_custom_call.1} parent=23 // pred_check_branch
          %133 = sbr.rel (%p131) target = $region28
        $region27: #{tpu_custom_call.1} parent=23 // pred_region
          %s134 = smul.u32 32, %s12
          %p135 = scmp.lt.s32.totalorder %s134, 63
          %s136 = scalar_select %p135, %s134, 63
          %s137 = smul.addr %s136, 2
          %s138 = smul.addr %s137, 8
          %s139 = scalar_lea.vmem %s0, %s138
          %s140 = smul.u32 32, %s12
        $region28: #{tpu_custom_call.1} parent=23 // pred_fallthru
          _
      $region24: #{tpu_custom_call.1} parent=5 // pred_fallthru
        _
      %p141 = scmp.le.s32.totalorder 1, %s12
      %p142 = scmp.lt.s32.totalorder %s12, 3
      %p143 = pnand %p141, %p142
      %p144 = pneg %p143
      // Predicated region
      $region29: #{tpu_custom_call.1} parent=5 // pred_check
        _
      $region30: #{tpu_custom_call.1} parent=5 // pred_check_branch
        %146 = sbr.rel (%p143) target = $region32
      $region31: #{tpu_custom_call.1} parent=5 // pred_region
        %s147 = ssub.s32 %s12, 1
        %s148 = smul.u32 32, %s17
        %p149 = scmp.lt.s32.totalorder %s148, 63
        %s150 = scalar_select %p149, %s148, 63
        %s151 = smul.addr %s150, 2
        %s152 = smul.addr %s151, 8
        %s153 = scalar_lea.vmem %s0, %s152
        %p154 = pneg %p38
        %p155 = pneg %p35
        %p156 = pneg %p59
        %p157 = pneg %p56
        %p158 = pneg %p80
        %p159 = pneg %p77
        %p160 = pneg %p106
        %p161 = pneg %p103
        %s162 = sand.u32 %s93, 1
        %s163 = scalar_lea.sflag [#allocation3], %s162
        %s164 = sand.u32 %s93, 1
        %s165 = smul.addr %s164, 256
        %s166 = scalar_lea.vmem [#allocation2], %s165
        %s167 = smul.u32 32, %s17
        %p168 = scmp.lt.s32.totalorder %s167, 63
        %s169 = scalar_select %p168, %s167, 63
        %s170 = smul.addr %s169, 2
        %s171 = smul.addr %s170, 8
        %s172 = scalar_lea.vmem %s0, %s171
        %s173 = smul.u32 32, %s17
        %s174 = smul.u32 32, %s17
        %v175 = vld [vmem:[%s172] sm:$0xff]
        %v176 = vld [vmem:[%s172 + $0x8] sm:$0xff]
        %v177 = vld [vmem:[%s172 + $0x10] sm:$0xff]
        %v178 = vld [vmem:[%s172 + $0x18] sm:$0xff]
        %v179 = vld [vmem:[%s172 + $0x20] sm:$0xff]
        %v180 = vld [vmem:[%s172 + $0x28] sm:$0xff]
        %v181 = vld [vmem:[%s172 + $0x30] sm:$0xff]
        %v182 = vld [vmem:[%s172 + $0x38] sm:$0xff]
        %v183 = vld [vmem:[%s172 + $0x40] sm:$0xff]
        %v184 = vld [vmem:[%s172 + $0x48] sm:$0xff]
        %v185 = vld [vmem:[%s172 + $0x50] sm:$0xff]
        %v186 = vld [vmem:[%s172 + $0x58] sm:$0xff]
        %v187 = vld [vmem:[%s172 + $0x60] sm:$0xff]
        %v188 = vld [vmem:[%s172 + $0x68] sm:$0xff]
        %v189 = vld [vmem:[%s172 + $0x70] sm:$0xff]
        %v190 = vld [vmem:[%s172 + $0x78] sm:$0xff]
        %v191 = vld [vmem:[%s172 + $0x80] sm:$0xff]
        %v192 = vld [vmem:[%s172 + $0x88] sm:$0xff]
        %v193 = vld [vmem:[%s172 + $0x90] sm:$0xff]
        %v194 = vld [vmem:[%s172 + $0x98] sm:$0xff]
        %v195 = vld [vmem:[%s172 + $0xa0] sm:$0xff]
        %v196 = vld [vmem:[%s172 + $0xa8] sm:$0xff]
        %v197 = vld [vmem:[%s172 + $0xb0] sm:$0xff]
        %v198 = vld [vmem:[%s172 + $0xb8] sm:$0xff]
        %v199 = vld [vmem:[%s172 + $0xc0] sm:$0xff]
        %v200 = vld [vmem:[%s172 + $0xc8] sm:$0xff]
        %v201 = vld [vmem:[%s172 + $0xd0] sm:$0xff]
        %v202 = vld [vmem:[%s172 + $0xd8] sm:$0xff]
        %v203 = vld [vmem:[%s172 + $0xe0] sm:$0xff]
        %v204 = vld [vmem:[%s172 + $0xe8] sm:$0xff]
        %v205 = vld [vmem:[%s172 + $0xf0] sm:$0xff]
        %v206 = vld [vmem:[%s172 + $0xf8] sm:$0xff]
        %v207 = vld [vmem:[%s172 + $0x100] sm:$0xff]
        %v208 = vld [vmem:[%s172 + $0x108] sm:$0xff]
        %v209 = vld [vmem:[%s172 + $0x110] sm:$0xff]
        %v210 = vld [vmem:[%s172 + $0x118] sm:$0xff]
        %v211 = vld [vmem:[%s172 + $0x120] sm:$0xff]
        %v212 = vld [vmem:[%s172 + $0x128] sm:$0xff]
        %v213 = vld [vmem:[%s172 + $0x130] sm:$0xff]
        %v214 = vld [vmem:[%s172 + $0x138] sm:$0xff]
        %v215 = vld [vmem:[%s172 + $0x140] sm:$0xff]
        %v216 = vld [vmem:[%s172 + $0x148] sm:$0xff]
        %v217 = vld [vmem:[%s172 + $0x150] sm:$0xff]
        %v218 = vld [vmem:[%s172 + $0x158] sm:$0xff]
        %v219 = vld [vmem:[%s172 + $0x160] sm:$0xff]
        %v220 = vld [vmem:[%s172 + $0x168] sm:$0xff]
        %v221 = vld [vmem:[%s172 + $0x170] sm:$0xff]
        %v222 = vld [vmem:[%s172 + $0x178] sm:$0xff]
        %v223 = vld [vmem:[%s172 + $0x180] sm:$0xff]
        %v224 = vld [vmem:[%s172 + $0x188] sm:$0xff]
        %v225 = vld [vmem:[%s172 + $0x190] sm:$0xff]
        %v226 = vld [vmem:[%s172 + $0x198] sm:$0xff]
        %v227 = vld [vmem:[%s172 + $0x1a0] sm:$0xff]
        %v228 = vld [vmem:[%s172 + $0x1a8] sm:$0xff]
        %v229 = vld [vmem:[%s172 + $0x1b0] sm:$0xff]
        %v230 = vld [vmem:[%s172 + $0x1b8] sm:$0xff]
        %v231 = vld [vmem:[%s172 + $0x1c0] sm:$0xff]
        %v232 = vld [vmem:[%s172 + $0x1c8] sm:$0xff]
        %v233 = vld [vmem:[%s172 + $0x1d0] sm:$0xff]
        %v234 = vld [vmem:[%s172 + $0x1d8] sm:$0xff]
        %v235 = vld [vmem:[%s172 + $0x1e0] sm:$0xff]
        %v236 = vld [vmem:[%s172 + $0x1e8] sm:$0xff]
        %v237 = vld [vmem:[%s172 + $0x1f0] sm:$0xff]
        %v238 = vld [vmem:[%s172 + $0x1f8] sm:$0xff]
        %v239 = vld [vmem:[%s1] sm:$0xff]
        %v240 = vld [vmem:[%s1 + $0x8] sm:$0xff]
        %v241 = vld [vmem:[%s1 + $0x10] sm:$0xff]
        %v242 = vld [vmem:[%s1 + $0x18] sm:$0xff]
        %v243 = vld [vmem:[%s1 + $0x20] sm:$0xff]
        %v244 = vld [vmem:[%s1 + $0x28] sm:$0xff]
        %v245 = vld [vmem:[%s1 + $0x30] sm:$0xff]
        %v246 = vld [vmem:[%s1 + $0x38] sm:$0xff]
        %v247 = vld [vmem:[%s1 + $0x40] sm:$0xff]
        %v248 = vld [vmem:[%s1 + $0x48] sm:$0xff]
        %v249 = vld [vmem:[%s1 + $0x50] sm:$0xff]
        %v250 = vld [vmem:[%s1 + $0x58] sm:$0xff]
        %v251 = vld [vmem:[%s1 + $0x60] sm:$0xff]
        %v252 = vld [vmem:[%s1 + $0x68] sm:$0xff]
        %v253 = vld [vmem:[%s1 + $0x70] sm:$0xff]
        %v254 = vld [vmem:[%s1 + $0x78] sm:$0xff]
        %v255 = vld [vmem:[%s1 + $0x80] sm:$0xff]
        %v256 = vld [vmem:[%s1 + $0x88] sm:$0xff]
        %v257 = vld [vmem:[%s1 + $0x90] sm:$0xff]
        %v258 = vld [vmem:[%s2] sm:$0x1]
        %v260 = vlaneseq
        %v261 = vshrl.u32 %v260, 7
        %v262 = vsub.s32 0, %v261
        %v263 = vrot.slane %v258, %v262
        %vm265 = vcmask 195584
        %v267 = vsel %vm265, %v176, 0
        %v270 = vsel %vm265, %v178, 0
        %v273 = vsel %vm265, %v180, 0
        %v276 = vsel %vm265, %v182, 0
        %v279 = vsel %vm265, %v184, 0
        %v282 = vsel %vm265, %v186, 0
        %v285 = vsel %vm265, %v188, 0
        %v288 = vsel %vm265, %v190, 0
        %v291 = vsel %vm265, %v192, 0
        %v294 = vsel %vm265, %v194, 0
        %v297 = vsel %vm265, %v196, 0
        %v300 = vsel %vm265, %v198, 0
        %v303 = vsel %vm265, %v200, 0
        %v306 = vsel %vm265, %v202, 0
        %v309 = vsel %vm265, %v204, 0
        %v312 = vsel %vm265, %v206, 0
        %v315 = vsel %vm265, %v208, 0
        %v318 = vsel %vm265, %v210, 0
        %v321 = vsel %vm265, %v212, 0
        %v324 = vsel %vm265, %v214, 0
        %v327 = vsel %vm265, %v216, 0
        %v330 = vsel %vm265, %v218, 0
        %v333 = vsel %vm265, %v220, 0
        %v336 = vsel %vm265, %v222, 0
        %v339 = vsel %vm265, %v224, 0
        %v342 = vsel %vm265, %v226, 0
        %v345 = vsel %vm265, %v228, 0
        %v348 = vsel %vm265, %v230, 0
        %v351 = vsel %vm265, %v232, 0
        %v354 = vsel %vm265, %v234, 0
        %v357 = vsel %vm265, %v236, 0
        %v360 = vsel %vm265, %v238, 0
        %362 = vmatprep.subr.mxu0 0.0
        %363 = vmatpush1.msra.mxu0 %v254
        %364 = vmatprep.subr.mxu0 0.0
        %365 = vmatpush1.msra.mxu0 %v253
        %366 = vmatprep.subr.mxu0 0.0
        %367 = vmatpush1.msra.mxu0 %v252
        %368 = vmatprep.subr.mxu0 0.0
        %369 = vmatpush1.msra.mxu0 %v251
        %370 = vmatprep.subr.mxu0 0.0
        %371 = vmatpush1.msra.mxu0 %v250
        %372 = vmatprep.subr.mxu0 0.0
        %373 = vmatpush1.msra.mxu0 %v249
        %374 = vmatprep.subr.mxu0 0.0
        %375 = vmatpush1.msra.mxu0 %v248
        %376 = vmatprep.subr.mxu0 0.0
        %377 = vmatpush1.msra.mxu0 %v247
        %378 = vmatprep.subr.mxu0 0.0
        %379 = vmatpush1.msra.mxu0 %v246
        %380 = vmatprep.subr.mxu0 0.0
        %381 = vmatpush1.msra.mxu0 %v245
        %382 = vmatprep.subr.mxu0 0.0
        %383 = vmatpush1.msra.mxu0 %v244
        %384 = vmatprep.subr.mxu0 0.0
        %385 = vmatpush1.msra.mxu0 %v243
        %386 = vmatprep.subr.mxu0 0.0
        %387 = vmatpush1.msra.mxu0 %v242
        %388 = vmatprep.subr.mxu0 0.0
        %389 = vmatpush1.msra.mxu0 %v241
        %390 = vmatprep.subr.mxu0 0.0
        %391 = vmatpush1.msra.mxu0 %v240
        %392 = vmatprep.subr.mxu0 0.0
        %393 = vmatpush1.msra.mxu0 %v239
        %394 = vmatprep.subr.mxu0 0.0
        %395 = vmatpush2.msra.mxu0 0.0
        %396 = vmatprep.subr.mxu0 0.0
        %397 = vmatpush2.msra.mxu0 0.0
        %398 = vmatprep.subr.mxu0 0.0
        %399 = vmatpush2.msra.mxu0 0.0
        %400 = vmatprep.subr.mxu0 0.0
        %401 = vmatpush2.msra.mxu0 0.0
        %402 = vmatprep.subr.mxu0 0.0
        %403 = vmatpush2.msra.mxu0 0.0
        %404 = vmatprep.subr.mxu0 0.0
        %405 = vmatpush2.msra.mxu0 0.0
        %406 = vmatprep.subr.mxu0 0.0
        %407 = vmatpush2.msra.mxu0 0.0
        %408 = vmatprep.subr.mxu0 0.0
        %409 = vmatpush2.msra.mxu0 0.0
        %410 = vmatprep.subr.mxu0 0.0
        %411 = vmatpush2.msra.mxu0 0.0
        %412 = vmatprep.subr.mxu0 0.0
        %413 = vmatpush2.msra.mxu0 0.0
        %414 = vmatprep.subr.mxu0 0.0
        %415 = vmatpush2.msra.mxu0 0.0
        %416 = vmatprep.subr.mxu0 0.0
        %417 = vmatpush2.msra.mxu0 0.0
        %418 = vmatprep.subr.mxu0 0.0
        %419 = vmatpush2.msra.mxu0 0.0
        %420 = vmatprep.subr.mxu0 0.0
        %421 = vmatpush2.msra.mxu0 %v257
        %422 = vmatprep.subr.mxu0 0.0
        %423 = vmatpush2.msra.mxu0 %v256
        %424 = vmatprep.subr.mxu0 0.0
        %425 = vmatpush2.msra.mxu0 %v255
        %426 = vmatprep.mubr.f32.mxu0 %v267
        %427 = vmatmul.mubr.f32.gmra.mxu0 %v175
        %v428 = vpop.f32.mrf.mxu0
        %v429 = vadd.f32 %v263, %v428
        %v430 = vpop.f32.mrf.mxu0
        %431 = vmatprep.mubr.f32.mxu0 %v270
        %432 = vmatmul.mubr.f32.gmra.mxu0 %v177
        %v433 = vpop.f32.mrf.mxu0
        %v434 = vadd.f32 %v263, %v433
        %v435 = vpop.f32.mrf.mxu0
        %436 = vmatprep.mubr.f32.mxu0 %v273
        %437 = vmatmul.mubr.f32.gmra.mxu0 %v179
        %v438 = vpop.f32.mrf.mxu0
        %v439 = vadd.f32 %v263, %v438
        %v440 = vpop.f32.mrf.mxu0
        %441 = vmatprep.mubr.f32.mxu0 %v276
        %442 = vmatmul.mubr.f32.gmra.mxu0 %v181
        %v443 = vpop.f32.mrf.mxu0
        %v444 = vadd.f32 %v263, %v443
        %v445 = vpop.f32.mrf.mxu0
        %446 = vmatprep.mubr.f32.mxu0 %v279
        %447 = vmatmul.mubr.f32.gmra.mxu0 %v183
        %v448 = vpop.f32.mrf.mxu0
        %v449 = vadd.f32 %v263, %v448
        %v450 = vpop.f32.mrf.mxu0
        %451 = vmatprep.mubr.f32.mxu0 %v282
        %452 = vmatmul.mubr.f32.gmra.mxu0 %v185
        %v453 = vpop.f32.mrf.mxu0
        %v454 = vadd.f32 %v263, %v453
        %v455 = vpop.f32.mrf.mxu0
        %456 = vmatprep.mubr.f32.mxu0 %v285
        %457 = vmatmul.mubr.f32.gmra.mxu0 %v187
        %v458 = vpop.f32.mrf.mxu0
        %v459 = vadd.f32 %v263, %v458
        %v460 = vpop.f32.mrf.mxu0
        %461 = vmatprep.mubr.f32.mxu0 %v288
        %462 = vmatmul.mubr.f32.gmra.mxu0 %v189
        %v463 = vpop.f32.mrf.mxu0
        %v464 = vadd.f32 %v263, %v463
        %v465 = vpop.f32.mrf.mxu0
        %466 = vmatprep.mubr.f32.mxu0 %v291
        %467 = vmatmul.mubr.f32.gmra.mxu0 %v191
        %v468 = vpop.f32.mrf.mxu0
        %v469 = vadd.f32 %v263, %v468
        %v470 = vpop.f32.mrf.mxu0
        %471 = vmatprep.mubr.f32.mxu0 %v294
        %472 = vmatmul.mubr.f32.gmra.mxu0 %v193
        %v473 = vpop.f32.mrf.mxu0
        %v474 = vadd.f32 %v263, %v473
        %v475 = vpop.f32.mrf.mxu0
        %476 = vmatprep.mubr.f32.mxu0 %v297
        %477 = vmatmul.mubr.f32.gmra.mxu0 %v195
        %v478 = vpop.f32.mrf.mxu0
        %v479 = vadd.f32 %v263, %v478
        %v480 = vpop.f32.mrf.mxu0
        %481 = vmatprep.mubr.f32.mxu0 %v300
        %482 = vmatmul.mubr.f32.gmra.mxu0 %v197
        %v483 = vpop.f32.mrf.mxu0
        %v484 = vadd.f32 %v263, %v483
        %v485 = vpop.f32.mrf.mxu0
        %486 = vmatprep.mubr.f32.mxu0 %v303
        %487 = vmatmul.mubr.f32.gmra.mxu0 %v199
        %v488 = vpop.f32.mrf.mxu0
        %v489 = vadd.f32 %v263, %v488
        %v490 = vpop.f32.mrf.mxu0
        %491 = vmatprep.mubr.f32.mxu0 %v306
        %492 = vmatmul.mubr.f32.gmra.mxu0 %v201
        %v493 = vpop.f32.mrf.mxu0
        %v494 = vadd.f32 %v263, %v493
        %v495 = vpop.f32.mrf.mxu0
        %496 = vmatprep.mubr.f32.mxu0 %v309
        %497 = vmatmul.mubr.f32.gmra.mxu0 %v203
        %v498 = vpop.f32.mrf.mxu0
        %v499 = vadd.f32 %v263, %v498
        %v500 = vpop.f32.mrf.mxu0
        %501 = vmatprep.mubr.f32.mxu0 %v312
        %502 = vmatmul.mubr.f32.gmra.mxu0 %v205
        %v503 = vpop.f32.mrf.mxu0
        %v504 = vadd.f32 %v263, %v503
        %v505 = vpop.f32.mrf.mxu0
        %506 = vmatprep.mubr.f32.mxu0 %v315
        %507 = vmatmul.mubr.f32.gmra.mxu0 %v207
        %v508 = vpop.f32.mrf.mxu0
        %v509 = vadd.f32 %v263, %v508
        %v510 = vpop.f32.mrf.mxu0
        %511 = vmatprep.mubr.f32.mxu0 %v318
        %512 = vmatmul.mubr.f32.gmra.mxu0 %v209
        %v513 = vpop.f32.mrf.mxu0
        %v514 = vadd.f32 %v263, %v513
        %v515 = vpop.f32.mrf.mxu0
        %516 = vmatprep.mubr.f32.mxu0 %v321
        %517 = vmatmul.mubr.f32.gmra.mxu0 %v211
        %v518 = vpop.f32.mrf.mxu0
        %v519 = vadd.f32 %v263, %v518
        %v520 = vpop.f32.mrf.mxu0
        %521 = vmatprep.mubr.f32.mxu0 %v324
        %522 = vmatmul.mubr.f32.gmra.mxu0 %v213
        %v523 = vpop.f32.mrf.mxu0
        %v524 = vadd.f32 %v263, %v523
        %v525 = vpop.f32.mrf.mxu0
        %526 = vmatprep.mubr.f32.mxu0 %v327
        %527 = vmatmul.mubr.f32.gmra.mxu0 %v215
        %v528 = vpop.f32.mrf.mxu0
        %v529 = vadd.f32 %v263, %v528
        %v530 = vpop.f32.mrf.mxu0
        %531 = vmatprep.mubr.f32.mxu0 %v330
        %532 = vmatmul.mubr.f32.gmra.mxu0 %v217
        %v533 = vpop.f32.mrf.mxu0
        %v534 = vadd.f32 %v263, %v533
        %v535 = vpop.f32.mrf.mxu0
        %536 = vmatprep.mubr.f32.mxu0 %v333
        %537 = vmatmul.mubr.f32.gmra.mxu0 %v219
        %v538 = vpop.f32.mrf.mxu0
        %v539 = vadd.f32 %v263, %v538
        %v540 = vpop.f32.mrf.mxu0
        %541 = vmatprep.mubr.f32.mxu0 %v336
        %542 = vmatmul.mubr.f32.gmra.mxu0 %v221
        %v543 = vpop.f32.mrf.mxu0
        %v544 = vadd.f32 %v263, %v543
        %v545 = vpop.f32.mrf.mxu0
        %546 = vmatprep.mubr.f32.mxu0 %v339
        %547 = vmatmul.mubr.f32.gmra.mxu0 %v223
        %v548 = vpop.f32.mrf.mxu0
        %v549 = vadd.f32 %v263, %v548
        %v550 = vpop.f32.mrf.mxu0
        %551 = vmatprep.mubr.f32.mxu0 %v342
        %552 = vmatmul.mubr.f32.gmra.mxu0 %v225
        %v553 = vpop.f32.mrf.mxu0
        %v554 = vadd.f32 %v263, %v553
        %v555 = vpop.f32.mrf.mxu0
        %556 = vmatprep.mubr.f32.mxu0 %v345
        %557 = vmatmul.mubr.f32.gmra.mxu0 %v227
        %v558 = vpop.f32.mrf.mxu0
        %v559 = vadd.f32 %v263, %v558
        %v560 = vpop.f32.mrf.mxu0
        %561 = vmatprep.mubr.f32.mxu0 %v348
        %562 = vmatmul.mubr.f32.gmra.mxu0 %v229
        %v563 = vpop.f32.mrf.mxu0
        %v564 = vadd.f32 %v263, %v563
        %v565 = vpop.f32.mrf.mxu0
        %566 = vmatprep.mubr.f32.mxu0 %v351
        %567 = vmatmul.mubr.f32.gmra.mxu0 %v231
        %v568 = vpop.f32.mrf.mxu0
        %v569 = vadd.f32 %v263, %v568
        %v570 = vpop.f32.mrf.mxu0
        %571 = vmatprep.mubr.f32.mxu0 %v354
        %572 = vmatmul.mubr.f32.gmra.mxu0 %v233
        %v573 = vpop.f32.mrf.mxu0
        %v574 = vadd.f32 %v263, %v573
        %v575 = vpop.f32.mrf.mxu0
        %576 = vmatprep.mubr.f32.mxu0 %v357
        %577 = vmatmul.mubr.f32.gmra.mxu0 %v235
        %v578 = vpop.f32.mrf.mxu0
        %v579 = vadd.f32 %v263, %v578
        %v580 = vpop.f32.mrf.mxu0
        %581 = vmatprep.mubr.f32.mxu0 %v360
        %582 = vmatmul.mubr.f32.gmra.mxu0 %v237
        %v583 = vpop.f32.mrf.mxu0
        %v584 = vadd.f32 %v263, %v583
        %v585 = vpop.f32.mrf.mxu0
        %586 = vdwg.mxu0
        %587 = vst [vmem:[%s166] sm:$0xff] %v429
        %588 = vst [vmem:[%s166 + $0x8] sm:$0xff] %v434
        %589 = vst [vmem:[%s166 + $0x10] sm:$0xff] %v439
        %590 = vst [vmem:[%s166 + $0x18] sm:$0xff] %v444
        %591 = vst [vmem:[%s166 + $0x20] sm:$0xff] %v449
        %592 = vst [vmem:[%s166 + $0x28] sm:$0xff] %v454
        %593 = vst [vmem:[%s166 + $0x30] sm:$0xff] %v459
        %594 = vst [vmem:[%s166 + $0x38] sm:$0xff] %v464
        %595 = vst [vmem:[%s166 + $0x40] sm:$0xff] %v469
        %596 = vst [vmem:[%s166 + $0x48] sm:$0xff] %v474
        %597 = vst [vmem:[%s166 + $0x50] sm:$0xff] %v479
        %598 = vst [vmem:[%s166 + $0x58] sm:$0xff] %v484
        %599 = vst [vmem:[%s166 + $0x60] sm:$0xff] %v489
        %600 = vst [vmem:[%s166 + $0x68] sm:$0xff] %v494
        %601 = vst [vmem:[%s166 + $0x70] sm:$0xff] %v499
        %602 = vst [vmem:[%s166 + $0x78] sm:$0xff] %v504
        %603 = vst [vmem:[%s166 + $0x80] sm:$0xff] %v509
        %604 = vst [vmem:[%s166 + $0x88] sm:$0xff] %v514
        %605 = vst [vmem:[%s166 + $0x90] sm:$0xff] %v519
        %606 = vst [vmem:[%s166 + $0x98] sm:$0xff] %v524
        %607 = vst [vmem:[%s166 + $0xa0] sm:$0xff] %v529
        %608 = vst [vmem:[%s166 + $0xa8] sm:$0xff] %v534
        %609 = vst [vmem:[%s166 + $0xb0] sm:$0xff] %v539
        %610 = vst [vmem:[%s166 + $0xb8] sm:$0xff] %v544
        %611 = vst [vmem:[%s166 + $0xc0] sm:$0xff] %v549
        %612 = vst [vmem:[%s166 + $0xc8] sm:$0xff] %v554
        %613 = vst [vmem:[%s166 + $0xd0] sm:$0xff] %v559
        %614 = vst [vmem:[%s166 + $0xd8] sm:$0xff] %v564
        %615 = vst [vmem:[%s166 + $0xe0] sm:$0xff] %v569
        %616 = vst [vmem:[%s166 + $0xe8] sm:$0xff] %v574
        %617 = vst [vmem:[%s166 + $0xf0] sm:$0xff] %v579
        %618 = vst [vmem:[%s166 + $0xf8] sm:$0xff] %v584
        %s619 = sand.u32 %s93, 1
        %s620 = scalar_lea.sflag [#allocation3], %s619
        %s621 = sand.u32 %s93, 1
        %s622 = smul.addr %s621, 256
        %s623 = scalar_lea.vmem [#allocation2], %s622
        // Predicated region
        $region33: #{tpu_custom_call.1} parent=31 // pred_check
          %p624 = pneg %p103
        $region34: #{tpu_custom_call.1} parent=31 // pred_check_branch
          %626 = sbr.rel (%p624) target = $region36
        $region35: #{tpu_custom_call.1} parent=31 // pred_region
          %s627 = smul.u32 32, %s17
          %s629 = ssub.s32 4096, 4096
          %630 = vsyncadd %s620, %s629
          %s631 = smul.addr %s627, 128
          %s632 = scalar_lea.hbm %s3, %s631
          %s633 = sshll.u32 %s623, 4
          %s634 = int_to_ptr.vmem [resolvable:$true] %s633
          %639 = dma.vmem_to_hbm [thread:$0]  %s634, 4096, %s632, %s620, 128, 128, 8
        $region36: #{tpu_custom_call.1} parent=31 // pred_fallthru
          _
      $region32: #{tpu_custom_call.1} parent=5 // pred_fallthru
        _
      %p640 = scmp.le.s32.totalorder 2, %s12
      // Predicated region
      $region37: #{tpu_custom_call.1} parent=5 // pred_check
        %p641 = pneg %p640
      $region38: #{tpu_custom_call.1} parent=5 // pred_check_branch
        %643 = sbr.rel (%p641) target = $region40
      $region39: #{tpu_custom_call.1} parent=5 // pred_region
        %s644 = ssub.s32 %s12, 2
        // Predicated region
        $region41: #{tpu_custom_call.1} parent=39 // pred_check
          %p645 = pneg %p109
        $region42: #{tpu_custom_call.1} parent=39 // pred_check_branch
          %647 = sbr.rel (%p645) target = $region44
        $region43: #{tpu_custom_call.1} parent=39 // pred_region
          %s648 = sand.u32 %s94, 1
          %s649 = scalar_lea.sflag [#allocation3], %s648
          %s650 = sand.u32 %s94, 1
          %s651 = smul.addr %s650, 256
          %s652 = scalar_lea.vmem [#allocation2], %s651
          %653 = dma.done %s649, 4096
        $region44: #{tpu_custom_call.1} parent=39 // pred_fallthru
          _
      $region40: #{tpu_custom_call.1} parent=5 // pred_fallthru
        _
    $region6: #{tpu_custom_call.1} parent=1 // loop_footer
      %s16 = sadd.s32 1, %s12
    $region7: #{tpu_custom_call.1} parent=1 // loop_footer_branch
      %11 = sbr.rel target = $region3
    $region8: #{tpu_custom_call.1} parent=1 // loop_exit
      _
    %654 = vsyncpa [#allocation3], 1
    %s655 = scalar_lea.sflag [#allocation3], 1
    %656 = vsyncpa %s655, 1

</llo_original>
